<compile_context>
chip_gen: v7x
topology: tpu7x:2x2x1
jax: 0.10.0
libtpu: 0.0.40
codegen_flags: <defaults>
</compile_context>

<pallas_src>
import functools

import jax
import jax.numpy as jnp
from jax import lax
from jax.experimental import pallas as pl
from jax.experimental.pallas import tpu as pltpu

_LANE = 128
# Double-buffered x-tile byte budget (2 buffers * TB * feat_tile * 4B).
_X_TILE_BUDGET = 8 * 1024 * 1024
_VMEM_LIMIT = 32 * 1024 * 1024


def _round_up(n: int, m: int) -> int:
    return ((n + m - 1) // m) * m


def _bytes_tb(feat_tile: int) -> int:
    """Largest multiple of 128 rows whose double-buffered f32 tile fits budget."""
    tb = _X_TILE_BUDGET // (2 * feat_tile * 4)
    return max(_LANE, (tb // _LANE) * _LANE)


# ---------------------------------------------------------------------------
# Simple path: full feature dim per tile, batch-only grid.
# ---------------------------------------------------------------------------
def _linreg_kernel(w_ref, b_ref, x_ref, o_ref):
    # w_ref: (1, D)  VMEM, resident   b_ref: (1, 1) SMEM
    # x_ref: (TB, D) VMEM, pipelined  o_ref: (1, TB) VMEM, lane-dense
    y = lax.dot_general(
        w_ref[...], x_ref[...],
        dimension_numbers=(((1,), (1,)), ((), ())),   # (1,D).(TB,D)^T -> (1,TB)
        preferred_element_type=jnp.float32,
    )
    o_ref[...] = (y + b_ref[0, 0]).astype(o_ref.dtype)


# ---------------------------------------------------------------------------
# Large-D fallback: feature (K) tiling with an accumulator scratch.
# ---------------------------------------------------------------------------
def _make_k_tiled_kernel(d_total: int, tk: int):
    ragged = (d_total % tk) != 0

    def kernel(w_ref, b_ref, x_ref, o_ref, acc_ref):
        k = pl.program_id(1)

        @pl.when(k == 0)
        def _init():
            acc_ref[...] = jnp.zeros_like(acc_ref)

        w_blk = w_ref[...]            # (1, TK)
        x_blk = x_ref[...]            # (TB, TK)
        if ragged:
            # Partial last K block: padded VMEM is undefined, so force the
            # invalid feature columns of BOTH operands to exact 0.0.
            base = k * tk
            w_col = lax.broadcasted_iota(jnp.int32, w_blk.shape, 1) + base
            x_col = lax.broadcasted_iota(jnp.int32, x_blk.shape, 1) + base
            w_blk = jnp.where(w_col < d_total, w_blk, 0.0)
            x_blk = jnp.where(x_col < d_total, x_blk, 0.0)

        acc_ref[...] += lax.dot_general(
            w_blk, x_blk,
            dimension_numbers=(((1,), (1,)), ((), ())),
            preferred_element_type=jnp.float32,
        )

        @pl.when(k == pl.num_programs(1) - 1)
        def _finalize():
            o_ref[...] = (acc_ref[...] + b_ref[0, 0]).astype(o_ref.dtype)

    return kernel


@functools.partial(jax.jit, static_argnames=("block_b", "block_d"))
def linear_regression_forward(x, w, *, block_b=None, block_d=None):
    """x: (B, D) float32, w: (D+1, 1) float32 -> (B, 1) float32."""
    B, D = x.shape
    assert w.shape == (D + 1, 1)

    w_row = w[:D, 0].reshape(1, D).astype(jnp.float32)   # lane-major weights
    bias = w[D, 0].reshape(1, 1).astype(jnp.float32)      # SMEM scalar

    # ---- feature (K) tiling decision -------------------------------------
    if block_d is not None:
        tk = min(_round_up(max(1, int(block_d)), _LANE), _round_up(D, _LANE))
    elif 2 * _LANE * D * 4 > _X_TILE_BUDGET:
        # Even a 128-row tile over the full feature dim busts the VMEM budget.
        tk = max(_LANE, (_X_TILE_BUDGET // (2 * _LANE * 4) // _LANE) * _LANE)
    else:
        tk = None
    k_tiled = (tk is not None) and (tk < D)
    feat_tile = tk if k_tiled else D

    # ---- batch tiling (validated: interior blocks are multiples of 128) ---
    if block_b is not None:
        tb = _round_up(max(1, int(block_b)), _LANE)
    else:
        tb = _bytes_tb(feat_tile)
    if tb >= B:
        tb = B                      # single full block; no alignment needed
    nb = pl.cdiv(B, tb)

    cost = pl.CostEstimate(
        flops=2 * B * D,
        transcendentals=0,
        bytes_accessed=4 * (B * D + D + 1 + B),
    )

    if not k_tiled:
        out = pl.pallas_call(
            _linreg_kernel,
            out_shape=jax.ShapeDtypeStruct((1, B), jnp.float32),
            grid=(nb,),
            in_specs=[
                pl.BlockSpec((1, D), lambda i: (0, 0)),               # weights
                pl.BlockSpec(memory_space=pltpu.MemorySpace.SMEM),    # bias
                pl.BlockSpec((tb, D), lambda i: (i, 0)),              # x tile
            ],
            out_specs=pl.BlockSpec((1, tb), lambda i: (0, i)),        # lane-dense
            compiler_params=pltpu.CompilerParams(
                dimension_semantics=("parallel",),
                vmem_limit_bytes=_VMEM_LIMIT,
            ),
            cost_estimate=cost,
        )(w_row, bias, x)
    else:
        nk = pl.cdiv(D, tk)
        out = pl.pallas_call(
            _make_k_tiled_kernel(D, tk),
            out_shape=jax.ShapeDtypeStruct((1, B), jnp.float32),
            grid=(nb, nk),
            in_specs=[
                pl.BlockSpec((1, tk), lambda i, k: (0, k)),           # weights
                pl.BlockSpec(memory_space=pltpu.MemorySpace.SMEM),    # bias
                pl.BlockSpec((tb, tk), lambda i, k: (i, k)),          # x tile
            ],
            out_specs=pl.BlockSpec((1, tb), lambda i, k: (0, i)),
            scratch_shapes=[pltpu.VMEM((1, tb), jnp.float32)],        # accumulator
            compiler_params=pltpu.CompilerParams(
                dimension_semantics=("parallel", "arbitrary"),
                vmem_limit_bytes=_VMEM_LIMIT,
            ),
            cost_estimate=cost,
        )(w_row, bias, x)

    # Free layout plumbing back to the PyTorch (B, 1) output shape.
    return out.reshape(B, 1)


def _ref(x, w):
    B = x.shape[0]
    x_aug = jnp.concatenate([x, jnp.ones((B, 1), jnp.float32)], axis=1)
    return x_aug @ w


if __name__ == "__main__":
    key = jax.random.PRNGKey(0)
    k1, k2, k3, k4, k5, k6 = jax.random.split(key, 6)

    # 1) Small shapes consistent with the module (in_dim=32): single full block.
    B, D = 8, 32
    x = jax.random.normal(k1, (B, D), dtype=jnp.float32)
    w = jax.random.normal(k2, (D + 1, 1), dtype=jnp.float32)
    out = jax.block_until_ready(linear_regression_forward(x, w))
    assert out.shape == (B, 1)
    assert jnp.allclose(out, _ref(x, w), atol=1e-3, rtol=1e-4)

    # 2) Ragged batch with no wrapper-side padding (partial last batch block).
    B2, D2 = 200, 32
    x2 = jax.random.normal(k3, (B2, D2), dtype=jnp.float32)
    w2 = jax.random.normal(k4, (D2 + 1, 1), dtype=jnp.float32)
    out2 = jax.block_until_ready(linear_regression_forward(x2, w2, block_b=128))
    assert jnp.allclose(out2, _ref(x2, w2), atol=1e-3, rtol=1e-4)

    # 3) Large-D fallback path (K-tiled accumulator), ragged on both axes.
    B3, D3 = 136, 300
    x3 = jax.random.normal(k5, (B3, D3), dtype=jnp.float32)
    w3 = jax.random.normal(k6, (D3 + 1, 1), dtype=jnp.float32)
    out3 = jax.block_until_ready(
        linear_regression_forward(x3, w3, block_b=128, block_d=128))
    assert jnp.allclose(out3, _ref(x3, w3), atol=1e-3, rtol=1e-4)

    print("KERNEL_OK")
</pallas_src>

<mosaic_0001>
module attributes {stable_mosaic.version = 11 : i64} {
  func.func @_linreg_kernel(%arg0: i32, %arg1: memref<1x32xf32, #tpu.memory_space<vmem>>, %arg2: memref<1x1xf32, #tpu.memory_space<smem>>, %arg3: memref<8x32xf32, #tpu.memory_space<vmem>>, %arg4: memref<1x8xf32, #tpu.memory_space<vmem>>) attributes {dimension_semantics = [#tpu.dimension_semantics<parallel>], iteration_bounds = array<i64: 1>, scalar_prefetch = 0 : i64, scratch_operands = 0 : i64, tpu.core_type = #tpu.core_type<tc>, window_params = [{pipeline_mode = #tpu.pipeline_mode<synchronous>, transform_indices = @transform_0, window_bounds = array<i64: 1, 32>}, {transform_indices = @transform_1, window_bounds = array<i64: 1, 1>}, {transform_indices = @transform_2, window_bounds = array<i64: 8, 32>}, {transform_indices = @transform_3, window_bounds = array<i64: 1, 8>}]} {
    %c0 = arith.constant 0 : index
    %c0_0 = arith.constant 0 : index
    %0 = vector.load %arg1[%c0, %c0_0] : memref<1x32xf32, #tpu.memory_space<vmem>>, vector<1x32xf32>
    %c0_1 = arith.constant 0 : index
    %c0_2 = arith.constant 0 : index
    %1 = vector.load %arg3[%c0_1, %c0_2] : memref<8x32xf32, #tpu.memory_space<vmem>>, vector<8x32xf32>
    %cst = arith.constant dense<0.000000e+00> : vector<1x8xf32>
    %2 = tpu.matmul %0, %1, %cst {dimension_numbers = #tpu.dot_dimension_numbers<[1], [1], [0], [0], [0, 0, 1, 0], [], []>} : vector<1x32xf32>, vector<8x32xf32>, vector<1x8xf32> -> vector<1x8xf32>
    %c0_3 = arith.constant 0 : index
    %c0_4 = arith.constant 0 : index
    %3 = memref.load %arg2[%c0_3, %c0_4] : memref<1x1xf32, #tpu.memory_space<smem>>
    %4 = vector.broadcast %3 : f32 to vector<1x8xf32>
    %5 = arith.addf %2, %4 : vector<1x8xf32>
    %c0_5 = arith.constant 0 : index
    %c0_6 = arith.constant 0 : index
    %6 = vector.load %arg4[%c0_5, %c0_6] : memref<1x8xf32, #tpu.memory_space<vmem>>, vector<1x8xf32>
    tpu.vector_store %arg4[%c0_5, %c0_6], %5 {strides = array<i32>} : memref<1x8xf32, #tpu.memory_space<vmem>>, vector<1x8xf32>,
    return
  }
  func.func @transform_0(%arg0: i32) -> (i32, i32) {
    %c0_i32 = arith.constant 0 : i32
    %c0_i32_0 = arith.constant 0 : i32
    %c0_i32_1 = arith.constant 0 : i32
    return %c0_i32, %c0_i32_0 : i32, i32
  }
  func.func @transform_1(%arg0: i32) -> (i32, i32) {
    %c0_i32 = arith.constant 0 : i32
    %c0_i32_0 = arith.constant 0 : i32
    %c0_i32_1 = arith.constant 0 : i32
    return %c0_i32, %c0_i32_0 : i32, i32
  }
  func.func @transform_2(%arg0: i32) -> (i32, i32) {
    %c0_i32 = arith.constant 0 : i32
    %c0_i32_0 = arith.constant 0 : i32
    return %arg0, %c0_i32 : i32, i32
  }
  func.func @transform_3(%arg0: i32) -> (i32, i32) {
    %c0_i32 = arith.constant 0 : i32
    %c0_i32_0 = arith.constant 0 : i32
    return %c0_i32, %arg0 : i32, i32
  }
}

</mosaic_0001>

<llo_original>
// kernel: linear_regression_forward.1
$region0: #{linear_regression_forward.1}
  #allocation0 [shape = 'u32[]', space=smem, size = 0x4, offset = 0x4, fixed_abs, tag = 'smem constant byte address 0x4 - core index']
  #allocation1 [shape = 'u32[144,128]{1,0:T(1,128)}', space=vmem, size = 0x12000, scoped, tag = 'internal scratch']
  #allocation2 [shape = 'f32[1,1]{1,0:T(1,128)S(6)}', space=smem, size = 0x200, scoped, tag = 'scoped memory for linear_regression_forward.1']
  %s0 = inlined_call_operand.vmem [shape: f32[1,32], index: 0, kind: input, shape index: {}]
  %s1 = inlined_call_operand.<no memory space> [shape: f32[1,1], index: 1, kind: input, shape index: {}]
  %s2 = inlined_call_operand.vmem [shape: f32[8,32], index: 2, kind: input, shape index: {}]
  %s3 = inlined_call_operand.hbm [shape: f32[1,8], index: 3, kind: output, shape index: {}]
  %s4 = sld [smem:[#allocation0]]
  $region22: #{linear_regression_forward.1} parent=0
    _
  %s6 = ssub.s32 1, %s4
  %s7 = scalar_select 0, %s6, %s4
  %8 = sst [smem:[#allocation2]] %s1
  $region1: #{linear_regression_forward.1} parent=0
    #allocation3 [shape = 'u8[512]{0}', space=vmem, size = 0x400, scoped, tag = 'output window, operand 0, single buffered']
    #allocation4 [shape = 's32[1]{0}', space=sflag, size = 0x4, scoped, tag = 'scoped memory for linear_regression_forward.1']
    %9 = vsyncpa [#allocation4], 0
    // Predicated region
    $region2: #{linear_regression_forward.1} parent=1 // pred_check
      _
    $region3: #{linear_regression_forward.1} parent=1 // pred_check_branch
      %11 = sbr.rel (0) target = $region5
    $region4: #{linear_regression_forward.1} parent=1 // pred_region
      _
    $region5: #{linear_regression_forward.1} parent=1 // pred_fallthru
      _
    // Predicated region
    $region6: #{linear_regression_forward.1} parent=1 // pred_check
      _
    $region7: #{linear_regression_forward.1} parent=1 // pred_check_branch
      %13 = sbr.rel (0) target = $region9
    $region8: #{linear_regression_forward.1} parent=1 // pred_region
      _
    $region9: #{linear_regression_forward.1} parent=1 // pred_fallthru
      _
    // Predicated region
    $region10: #{linear_regression_forward.1} parent=1 // pred_check
      _
    $region11: #{linear_regression_forward.1} parent=1 // pred_check_branch
      %15 = sbr.rel (0) target = $region13
    $region12: #{linear_regression_forward.1} parent=1 // pred_region
      _
    $region13: #{linear_regression_forward.1} parent=1 // pred_fallthru
      _
    %v16 = vld [vmem:[%s0] sm:$0x1]
    %v17 = vld [vmem:[%s2] sm:$0xff]
    %s18 = sld [smem:[#allocation2]]
    %v19 = vstv %s18
    %vm20 = vcmask 261120
    %v22 = vsel %vm20, %v16, 0
    %v25 = vsel %vm20, %v17, 0
    %27 = vmatprep.subr.mxu0 0.0
    %28 = vmatpush1.xpose.msra.mxu0 %v25
    %29 = vmatprep.subr.mxu0 0.0
    %30 = vmatpush1.xpose.msra.mxu0 0.0
    %31 = vmatprep.subr.mxu0 0.0
    %32 = vmatpush1.xpose.msra.mxu0 0.0
    %33 = vmatprep.subr.mxu0 0.0
    %34 = vmatpush1.xpose.msra.mxu0 0.0
    %35 = vmatprep.subr.mxu0 0.0
    %36 = vmatpush1.xpose.msra.mxu0 0.0
    %37 = vmatprep.subr.mxu0 0.0
    %38 = vmatpush1.xpose.msra.mxu0 0.0
    %39 = vmatprep.subr.mxu0 0.0
    %40 = vmatpush1.xpose.msra.mxu0 0.0
    %41 = vmatprep.subr.mxu0 0.0
    %42 = vmatpush1.xpose.msra.mxu0 0.0
    %43 = vmatprep.subr.mxu0 0.0
    %44 = vmatpush1.xpose.msra.mxu0 0.0
    %45 = vmatprep.subr.mxu0 0.0
    %46 = vmatpush1.xpose.msra.mxu0 0.0
    %47 = vmatprep.subr.mxu0 0.0
    %48 = vmatpush1.xpose.msra.mxu0 0.0
    %49 = vmatprep.subr.mxu0 0.0
    %50 = vmatpush1.xpose.msra.mxu0 0.0
    %51 = vmatprep.subr.mxu0 0.0
    %52 = vmatpush1.xpose.msra.mxu0 0.0
    %53 = vmatprep.subr.mxu0 0.0
    %54 = vmatpush1.xpose.msra.mxu0 0.0
    %55 = vmatprep.subr.mxu0 0.0
    %56 = vmatpush1.xpose.msra.mxu0 0.0
    %57 = vmatprep.subr.mxu0 0.0
    %58 = vmatpush1.xpose.msra.mxu0 0.0
    %59 = vmatprep.subr.mxu0 0.0
    %60 = vmatpush1.xpose.msra.mxu0 0.0
    %61 = vmatprep.subr.mxu0 0.0
    %62 = vmatpush1.xpose.msra.mxu0 0.0
    %63 = vmatprep.subr.mxu0 0.0
    %64 = vmatpush1.xpose.msra.mxu0 0.0
    %65 = vmatprep.subr.mxu0 0.0
    %66 = vmatpush1.xpose.msra.mxu0 0.0
    %67 = vmatprep.subr.mxu0 0.0
    %68 = vmatpush1.xpose.msra.mxu0 0.0
    %69 = vmatprep.subr.mxu0 0.0
    %70 = vmatpush1.xpose.msra.mxu0 0.0
    %71 = vmatprep.subr.mxu0 0.0
    %72 = vmatpush1.xpose.msra.mxu0 0.0
    %73 = vmatprep.subr.mxu0 0.0
    %74 = vmatpush1.xpose.msra.mxu0 0.0
    %75 = vmatprep.subr.mxu0 0.0
    %76 = vmatpush1.xpose.msra.mxu0 0.0
    %77 = vmatprep.subr.mxu0 0.0
    %78 = vmatpush1.xpose.msra.mxu0 0.0
    %79 = vmatprep.subr.mxu0 0.0
    %80 = vmatpush1.xpose.msra.mxu0 0.0
    %81 = vmatprep.subr.mxu0 0.0
    %82 = vmatpush1.xpose.msra.mxu0 0.0
    %83 = vmatprep.subr.mxu0 0.0
    %84 = vmatpush1.xpose.msra.mxu0 0.0
    %85 = vmatprep.subr.mxu0 0.0
    %86 = vmatpush1.xpose.msra.mxu0 0.0
    %87 = vmatprep.subr.mxu0 0.0
    %88 = vmatpush1.xpose.msra.mxu0 0.0
    %89 = vmatprep.subr.mxu0 0.0
    %90 = vmatpush1.xpose.msra.mxu0 0.0
    %91 = vmatprep.mubr.f32.mxu0 0.0
    %92 = vmatmul.mubr.f32.gmra.mrb[0].mxu0 %v22
    %v93 = vpop.f32.mrb[0].mxu0
    %v94 = vadd.f32 %v19, %v93
    %v95 = vpop.f32.mrb[0].mxu0
    %96 = vdwg.mxu0
    %vm97 = vcmask 57344
    %98 = vst.msk [vmem:[#allocation3] sm:$0x1] %vm97, %v94
    // Predicated region
    $region14: #{linear_regression_forward.1} parent=1 // pred_check
      _
    $region15: #{linear_regression_forward.1} parent=1 // pred_check_branch
      %100 = sbr.rel (0) target = $region17
    $region16: #{linear_regression_forward.1} parent=1 // pred_region
      %s102 = ssub.s32 16, 16
      %103 = vsyncadd [#allocation4], %s102
      %s105 = sshll.u32 [#allocation3], 4
      %s106 = int_to_ptr.vmem [resolvable:$true] %s105
      %108 = dma.vmem_to_hbm [thread:$0]  %s106, 16, %s3, [#allocation4]
    $region17: #{linear_regression_forward.1} parent=1 // pred_fallthru
      _
    // Predicated region
    $region18: #{linear_regression_forward.1} parent=1 // pred_check
      _
    $region19: #{linear_regression_forward.1} parent=1 // pred_check_branch
      %110 = sbr.rel (0) target = $region21
    $region20: #{linear_regression_forward.1} parent=1 // pred_region
      %111 = dma.done [#allocation4], 16
    $region21: #{linear_regression_forward.1} parent=1 // pred_fallthru
      _
    %112 = vsyncpa [#allocation4], 1

</llo_original>
